<compile_context>
chip_gen: v5e
topology: v5e:2x2
jax: 0.10.0
libtpu: 0.0.40
codegen_flags: <defaults>
</compile_context>

<pallas_src>
import functools
import math

import jax
import jax.numpy as jnp
from jax import lax
from jax.experimental import pallas as pl
from jax.experimental.pallas import tpu as pltpu


def _round_up(x, m):
    return (x + m - 1) // m * m


def _pick_tile_cout(cout, cpg):
    """Smallest multiple of cpg that divides Cout and is >= min(Cout, 128).

    Result is either Cout itself or a multiple of 8 (since Cout = 16 * cpg),
    so the BlockSpec sublane constraint is always satisfied.
    """
    target = min(cout, 128)
    t = cpg
    while t < cout:
        if cout % t == 0 and t >= target:
            return t
        t += cpg
    return cout


def _conv_gn_elu_kernel(cols_ref, w_ref, params_ref, gsum_ref, gbcast_ref,
                        o_ref, *, eps, n_valid, mask_cols):
    """One grid step == one (batch, Cout-tile) pair.

    cols_ref   : (1, K*K*Cin, HoWo_pad)   im2col'd input (bf16), lane-dense
    w_ref      : (tile_cout, K*K*Cin)     conv weights (bf16)
    params_ref : (tile_cout, 3)           [bias | gamma | beta] (f32)
    gsum_ref   : (g_tile, tile_cout)      group-sum matrix, 1/(cpg*HoWo) inside group
    gbcast_ref : (tile_cout, g_tile)      group->channel broadcast (0/1 indicator)
    o_ref      : (1, tile_cout, HoWo_pad) output, already NC(HW)-ordered
    """
    cols = cols_ref[0]                                        # (KKC, HoWo_pad)

    # ---- convolution: a single MXU matmul, f32 accumulation ----
    acc = jnp.dot(w_ref[...], cols,
                  preferred_element_type=jnp.float32)         # (tc, HoWo_pad)

    params = params_ref[...]                                  # (tc, 3) f32
    bias = params[:, 0:1]
    gamma = params[:, 1:2]
    beta = params[:, 2:3]
    acc = acc + bias                                          # lane broadcast

    # Padded spatial columns must not contribute to the GroupNorm statistics.
    if mask_cols:
        lane = lax.broadcasted_iota(jnp.int32, acc.shape, 1)
        acc = jnp.where(lane < n_valid, acc, 0.0)

    # ---- GroupNorm statistics (f32, one-pass E[x^2]-mean^2 with clamp) ----
    ch_sum = jnp.sum(acc, axis=1, keepdims=True)              # (tc, 1)
    ch_sq = jnp.sum(acc * acc, axis=1, keepdims=True)         # (tc, 1)
    col_id = lax.broadcasted_iota(jnp.int32, (acc.shape[0], 2), 1)
    stats = jnp.where(col_id == 0, ch_sum, ch_sq)             # (tc, 2)

    gstats = jnp.dot(gsum_ref[...], stats,
                     preferred_element_type=jnp.float32)      # (g, 2): mean, E[x^2]
    cstats = jnp.dot(gbcast_ref[...], gstats,
                     preferred_element_type=jnp.float32)      # (tc, 2) per-channel
    mean = cstats[:, 0:1]
    var = jnp.maximum(cstats[:, 1:2] - mean * mean, 0.0)      # clamp tiny negatives
    inv = lax.rsqrt(var + eps)

    yn = (acc - mean) * (inv * gamma) + beta

    # ---- ELU (alpha = 1); min() keeps the untaken exp branch finite ----
    out = jnp.where(yn > 0, yn, jnp.exp(jnp.minimum(yn, 0.0)) - 1.0)
    o_ref[0] = out.astype(o_ref.dtype)


def conv2d_gn_elu(x_nchw, w_oihw, bias, gamma, beta, *, kernel_size, stride,
                  groups=16, eps=1e-5, out_dtype=jnp.float32):
    """Pallas implementation of Conv2D(pad -> conv -> GroupNorm(16) -> ELU)."""
    N, Cin, H, W = x_nchw.shape
    Cout = w_oihw.shape[0]
    K = kernel_size
    pad = K // 2
    Hp, Wp = H + 2 * pad, W + 2 * pad
    Ho = (Hp - K) // stride + 1
    Wo = (Wp - K) // stride + 1
    assert Cout % groups == 0, "GroupNorm(16) requires Cout % 16 == 0"
    cpg = Cout // groups
    KKC = K * K * Cin
    HoWo = Ho * Wo
    HoWo_pad = _round_up(HoWo, 128)                           # lane-dense output

    # Cout tile: full Cout (or >=128 rows for large Cout), always a multiple of
    # cpg so GroupNorm groups never straddle tiles.
    tile_cout = _pick_tile_cout(Cout, cpg)
    n_ctiles = Cout // tile_cout
    g_tile = tile_cout // cpg

    # ---- wrapper-side layout plumbing (plain JAX, cheap at Cin=4) ----
    #   cols[n, ci*K*K + kh*K + kw, i*Wo + j] = xp[n, ci, i*s + kh, j*s + kw]
    xp = jnp.pad(x_nchw, ((0, 0), (0, 0), (pad, pad), (pad, pad)))
    taps = []
    for kh in range(K):
        for kw in range(K):
            taps.append(
                lax.slice(
                    xp,
                    (0, 0, kh, kw),
                    (N, Cin,
                     kh + (Ho - 1) * stride + 1,
                     kw + (Wo - 1) * stride + 1),
                    (1, 1, stride, stride),
                )
            )
    cols = jnp.stack(taps, axis=2)                            # (N, Cin, K*K, Ho, Wo)
    cols = cols.reshape(N, KKC, HoWo)
    if HoWo_pad != HoWo:
        cols = jnp.pad(cols, ((0, 0), (0, 0), (0, HoWo_pad - HoWo)))
    cols = cols.astype(jnp.bfloat16)                          # bf16 MXU operand

    # Weights: (Cout, Cin, K, K) -> (Cout, Cin*K*K); same (ci, kh, kw) order.
    w_flat = w_oihw.reshape(Cout, KKC).astype(jnp.bfloat16)

    # bias / gamma / beta packed into one operand -> single DMA per step.
    params = jnp.stack([bias, gamma, beta], axis=1).astype(jnp.float32)  # (Cout, 3)

    # Rectangular GroupNorm matrices for ONE Cout tile (identical for every
    # tile because tile_cout is a multiple of cpg).
    lid = jnp.arange(tile_cout) // cpg                        # channel -> group id
    gid = jnp.arange(g_tile)
    gsum = (gid[:, None] == lid[None, :]).astype(jnp.float32) / float(cpg * HoWo)
    gbcast = (lid[:, None] == gid[None, :]).astype(jnp.float32)

    kernel = functools.partial(_conv_gn_elu_kernel, eps=eps, n_valid=HoWo,
                               mask_cols=(HoWo_pad != HoWo))

    # Explicit scoped-VMEM budget: 2x (double-buffered) blocks + f32 temporaries,
    # with headroom; keeps v5e (16 MiB default) from down-tiling and stays under
    # v7x's 64 MiB physical VMEM.
    out_isize = jnp.dtype(out_dtype).itemsize
    bytes_blocks = (KKC * HoWo_pad * 2                         # cols (bf16)
                    + tile_cout * KKC * 2                      # weights (bf16)
                    + tile_cout * HoWo_pad * out_isize         # output
                    + 3 * _round_up(tile_cout, 8) * 128 * 4)   # params/gsum/gbcast
    bytes_tmp = 4 * tile_cout * HoWo_pad * 4                   # in-kernel f32 temps
    needed = 2 * bytes_blocks + bytes_tmp
    vmem_limit = int(min(max(2 * needed, 16 * 2**20), 64 * 2**20))

    out = pl.pallas_call(
        kernel,
        out_shape=jax.ShapeDtypeStruct((N, Cout, HoWo_pad), out_dtype),
        grid_spec=pltpu.PrefetchScalarGridSpec(
            num_scalar_prefetch=0,
            grid=(N, n_ctiles),   # c innermost -> cols block reused across c
            in_specs=[
                pl.BlockSpec((1, KKC, HoWo_pad), lambda n, c: (n, 0, 0)),
                pl.BlockSpec((tile_cout, KKC), lambda n, c: (c, 0)),
                pl.BlockSpec((tile_cout, 3), lambda n, c: (c, 0)),
                pl.BlockSpec((g_tile, tile_cout), lambda n, c: (0, 0)),
                pl.BlockSpec((tile_cout, g_tile), lambda n, c: (0, 0)),
            ],
            out_specs=pl.BlockSpec((1, tile_cout, HoWo_pad),
                                   lambda n, c: (n, c, 0)),
        ),
        compiler_params=pltpu.CompilerParams(
            dimension_semantics=("parallel", "arbitrary"),
            vmem_limit_bytes=vmem_limit,
        ),
    )(cols, w_flat, params, gsum, gbcast)

    # (N, Cout, Ho*Wo) is already NCHW-ordered; drop lane padding, then a
    # metadata-only reshape.
    if HoWo_pad != HoWo:
        out = out[:, :, :HoWo]
    return out.reshape(N, Cout, Ho, Wo)


def _reference(x_nchw, w_oihw, bias, gamma, beta, *, kernel_size, stride,
               groups=16, eps=1e-5, conv_dtype=jnp.float32):
    """Pure-JAX reference matching PyTorch semantics (for self-check)."""
    K = kernel_size
    pad = K // 2
    xp = jnp.pad(x_nchw, ((0, 0), (0, 0), (pad, pad), (pad, pad)))
    y = lax.conv_general_dilated(
        xp.astype(conv_dtype), w_oihw.astype(conv_dtype),
        window_strides=(stride, stride), padding="VALID",
        dimension_numbers=("NCHW", "OIHW", "NCHW"),
        preferred_element_type=jnp.float32,
    ) + bias[None, :, None, None]
    N, C, Ho, Wo = y.shape
    cpg = C // groups
    yr = y.reshape(N, groups, cpg, Ho, Wo)
    mean = yr.mean(axis=(2, 3, 4), keepdims=True)
    var = ((yr - mean) ** 2).mean(axis=(2, 3, 4), keepdims=True)
    yn = (yr - mean) / jnp.sqrt(var + eps)
    yn = yn.reshape(N, C, Ho, Wo) * gamma[None, :, None, None] + beta[None, :, None, None]
    return jnp.where(yn > 0, yn, jnp.exp(jnp.minimum(yn, 0.0)) - 1.0)


if __name__ == "__main__":
    # Module config: in_channels=4, out_channels=32 (divisible by 16 groups),
    # kernel_size=3, stride=1.
    N, Cin, H, W = 2, 4, 16, 16
    Cout, K, stride = 32, 3, 1

    key = jax.random.PRNGKey(0)
    kx, kw, kb = jax.random.split(key, 3)
    x = jax.random.normal(kx, (N, Cin, H, W), dtype=jnp.float32)
    w = jax.random.normal(kw, (Cout, Cin, K, K), dtype=jnp.float32) * 0.1
    b = jax.random.normal(kb, (Cout,), dtype=jnp.float32) * 0.1
    gamma = jnp.ones((Cout,), dtype=jnp.float32)   # GroupNorm default init
    beta = jnp.zeros((Cout,), dtype=jnp.float32)

    out = conv2d_gn_elu(x, w, b, gamma, beta, kernel_size=K, stride=stride)
    out = jax.block_until_ready(out)
    assert out.shape == (N, Cout, H, W)

    # Tight check vs. a reference using the same bf16 conv operands / f32 accum.
    ref_bf16 = _reference(x, w, b, gamma, beta, kernel_size=K, stride=stride,
                          conv_dtype=jnp.bfloat16)
    err_tight = float(jnp.max(jnp.abs(out - ref_bf16)))
    assert jnp.allclose(out, ref_bf16, atol=5e-3, rtol=5e-3), err_tight

    # Loose check vs. the pure-f32 PyTorch-semantics reference (bf16 operand
    # rounding in the conv is the only source of divergence).
    ref_f32 = _reference(x, w, b, gamma, beta, kernel_size=K, stride=stride,
                         conv_dtype=jnp.float32)
    err_f32 = float(jnp.max(jnp.abs(out - ref_f32)))
    assert jnp.allclose(out, ref_f32, atol=5e-2, rtol=5e-2), err_f32

    print("KERNEL_OK")
</pallas_src>

<mosaic_0001>
module attributes {stable_mosaic.version = 11 : i64} {
  func.func @_conv_gn_elu_kernel(%arg0: i32, %arg1: i32, %arg2: memref<1x36x256xbf16, #tpu.memory_space<vmem>>, %arg3: memref<32x36xbf16, #tpu.memory_space<vmem>>, %arg4: memref<32x3xf32, #tpu.memory_space<vmem>>, %arg5: memref<16x32xf32, #tpu.memory_space<vmem>>, %arg6: memref<32x16xf32, #tpu.memory_space<vmem>>, %arg7: memref<1x32x256xf32, #tpu.memory_space<vmem>>) attributes {dimension_semantics = [#tpu.dimension_semantics<parallel>, #tpu.dimension_semantics<arbitrary>], iteration_bounds = array<i64: 2, 1>, scalar_prefetch = 0 : i64, scratch_operands = 0 : i64, tpu.core_type = #tpu.core_type<tc>, window_params = [{transform_indices = @transform_0, window_bounds = array<i64: 1, 36, 256>}, {transform_indices = @transform_1, window_bounds = array<i64: 32, 36>}, {transform_indices = @transform_2, window_bounds = array<i64: 32, 3>}, {pipeline_mode = #tpu.pipeline_mode<synchronous>, transform_indices = @transform_3, window_bounds = array<i64: 16, 32>}, {pipeline_mode = #tpu.pipeline_mode<synchronous>, transform_indices = @transform_4, window_bounds = array<i64: 32, 16>}, {transform_indices = @transform_5, window_bounds = array<i64: 1, 32, 256>}]} {
    %c0 = arith.constant 0 : index
    %c0_0 = arith.constant 0 : index
    %c0_1 = arith.constant 0 : index
    %0 = vector.load %arg2[%c0, %c0_0, %c0_1] : memref<1x36x256xbf16, #tpu.memory_space<vmem>>, vector<1x36x256xbf16>
    %1 = vector.shape_cast %0 : vector<1x36x256xbf16> to vector<36x256xbf16>
    %c0_2 = arith.constant 0 : index
    %c0_3 = arith.constant 0 : index
    %2 = vector.load %arg3[%c0_2, %c0_3] : memref<32x36xbf16, #tpu.memory_space<vmem>>, vector<32x36xbf16>
    %cst = arith.constant dense<0.000000e+00> : vector<32x256xf32>
    %3 = tpu.matmul %2, %1, %cst {dimension_numbers = #tpu.dot_dimension_numbers<[1], [0], [0], [1], [0, 0, 1, 1], [], []>} : vector<32x36xbf16>, vector<36x256xbf16>, vector<32x256xf32> -> vector<32x256xf32>
    %c0_4 = arith.constant 0 : index
    %c0_5 = arith.constant 0 : index
    %4 = vector.load %arg4[%c0_4, %c0_5] : memref<32x3xf32, #tpu.memory_space<vmem>>, vector<32x3xf32>
    %5 = vector.extract_strided_slice %4 {offsets = [0, 0], sizes = [32, 1], strides = [1, 1]} : vector<32x3xf32> to vector<32x1xf32>
    %6 = vector.extract_strided_slice %4 {offsets = [0, 1], sizes = [32, 1], strides = [1, 1]} : vector<32x3xf32> to vector<32x1xf32>
    %7 = vector.extract_strided_slice %4 {offsets = [0, 2], sizes = [32, 1], strides = [1, 1]} : vector<32x3xf32> to vector<32x1xf32>
    %8 = vector.broadcast %5 : vector<32x1xf32> to vector<32x256xf32>
    %9 = arith.addf %3, %8 : vector<32x256xf32>
    %cst_6 = arith.constant dense<0.000000e+00> : vector<32xf32>
    %10 = vector.multi_reduction <add>, %9, %cst_6 [1] : vector<32x256xf32> to vector<32xf32>
    %11 = vector.shape_cast %10 : vector<32xf32> to vector<32x1xf32>
    %12 = arith.mulf %9, %9 : vector<32x256xf32>
    %cst_7 = arith.constant dense<0.000000e+00> : vector<32xf32>
    %13 = vector.multi_reduction <add>, %12, %cst_7 [1] : vector<32x256xf32> to vector<32xf32>
    %14 = vector.shape_cast %13 : vector<32xf32> to vector<32x1xf32>
    %15 = tpu.iota {dimensions = array<i32: 1>} : vector<32x2xi32>
    %c0_i32 = arith.constant 0 : i32
    %16 = vector.broadcast %c0_i32 : i32 to vector<32x2xi32>
    %17 = arith.cmpi eq, %15, %16 : vector<32x2xi32>
    %18 = vector.shape_cast %11 : vector<32x1xf32> to vector<32x1xf32>
    %19 = vector.broadcast %18 : vector<32x1xf32> to vector<32x2xf32>
    %20 = vector.shape_cast %14 : vector<32x1xf32> to vector<32x1xf32>
    %21 = vector.broadcast %20 : vector<32x1xf32> to vector<32x2xf32>
    %22 = arith.select %17, %19, %21 : vector<32x2xi1>, vector<32x2xf32>
    %c0_8 = arith.constant 0 : index
    %c0_9 = arith.constant 0 : index
    %23 = vector.load %arg5[%c0_8, %c0_9] : memref<16x32xf32, #tpu.memory_space<vmem>>, vector<16x32xf32>
    %cst_10 = arith.constant dense<0.000000e+00> : vector<16x2xf32>
    %24 = tpu.matmul %23, %22, %cst_10 {dimension_numbers = #tpu.dot_dimension_numbers<[1], [0], [0], [1], [0, 0, 1, 1], [], []>} : vector<16x32xf32>, vector<32x2xf32>, vector<16x2xf32> -> vector<16x2xf32>
    %c0_11 = arith.constant 0 : index
    %c0_12 = arith.constant 0 : index
    %25 = vector.load %arg6[%c0_11, %c0_12] : memref<32x16xf32, #tpu.memory_space<vmem>>, vector<32x16xf32>
    %cst_13 = arith.constant dense<0.000000e+00> : vector<32x2xf32>
    %26 = tpu.matmul %25, %24, %cst_13 {dimension_numbers = #tpu.dot_dimension_numbers<[1], [0], [0], [1], [0, 0, 1, 1], [], []>} : vector<32x16xf32>, vector<16x2xf32>, vector<32x2xf32> -> vector<32x2xf32>
    %27 = vector.extract_strided_slice %26 {offsets = [0, 0], sizes = [32, 1], strides = [1, 1]} : vector<32x2xf32> to vector<32x1xf32>
    %28 = vector.extract_strided_slice %26 {offsets = [0, 1], sizes = [32, 1], strides = [1, 1]} : vector<32x2xf32> to vector<32x1xf32>
    %29 = arith.mulf %27, %27 : vector<32x1xf32>
    %30 = arith.subf %28, %29 : vector<32x1xf32>
    %cst_14 = arith.constant 0.000000e+00 : f32
    %31 = vector.broadcast %cst_14 : f32 to vector<32x1xf32>
    %32 = arith.maximumf %30, %31 : vector<32x1xf32>
    %cst_15 = arith.constant 9.99999974E-6 : f32
    %33 = vector.broadcast %cst_15 : f32 to vector<32x1xf32>
    %34 = arith.addf %32, %33 : vector<32x1xf32>
    %35 = math.rsqrt %34 : vector<32x1xf32>
    %36 = vector.broadcast %27 : vector<32x1xf32> to vector<32x256xf32>
    %37 = arith.subf %9, %36 : vector<32x256xf32>
    %38 = arith.mulf %35, %6 : vector<32x1xf32>
    %39 = vector.broadcast %38 : vector<32x1xf32> to vector<32x256xf32>
    %40 = arith.mulf %37, %39 : vector<32x256xf32>
    %41 = vector.broadcast %7 : vector<32x1xf32> to vector<32x256xf32>
    %42 = arith.addf %40, %41 : vector<32x256xf32>
    %cst_16 = arith.constant 0.000000e+00 : f32
    %43 = vector.broadcast %cst_16 : f32 to vector<32x256xf32>
    %44 = arith.cmpf ogt, %42, %43 : vector<32x256xf32>
    %cst_17 = arith.constant 0.000000e+00 : f32
    %45 = vector.broadcast %cst_17 : f32 to vector<32x256xf32>
    %46 = arith.minimumf %42, %45 : vector<32x256xf32>
    %47 = math.exp %46 : vector<32x256xf32>
    %cst_18 = arith.constant 1.000000e+00 : f32
    %48 = vector.broadcast %cst_18 : f32 to vector<32x256xf32>
    %49 = arith.subf %47, %48 : vector<32x256xf32>
    %50 = arith.select %44, %42, %49 : vector<32x256xi1>, vector<32x256xf32>
    %c0_19 = arith.constant 0 : index
    %c0_20 = arith.constant 0 : index
    %c0_21 = arith.constant 0 : index
    %51 = vector.load %arg7[%c0_19, %c0_20, %c0_21] : memref<1x32x256xf32, #tpu.memory_space<vmem>>, vector<1x32x256xf32>
    %52 = vector.shape_cast %51 : vector<1x32x256xf32> to vector<32x256xf32>
    %53 = vector.shape_cast %50 : vector<32x256xf32> to vector<1x32x256xf32>
    tpu.vector_store %arg7[%c0_19, %c0_20, %c0_21], %53 {strides = array<i32>} : memref<1x32x256xf32, #tpu.memory_space<vmem>>, vector<1x32x256xf32>,
    return
  }
  func.func @transform_0(%arg0: i32, %arg1: i32) -> (i32, i32, i32) {
    %c0_i32 = arith.constant 0 : i32
    %c0_i32_0 = arith.constant 0 : i32
    %c0_i32_1 = arith.constant 0 : i32
    return %arg0, %c0_i32, %c0_i32_0 : i32, i32, i32
  }
  func.func @transform_1(%arg0: i32, %arg1: i32) -> (i32, i32) {
    %c0_i32 = arith.constant 0 : i32
    %c0_i32_0 = arith.constant 0 : i32
    return %arg1, %c0_i32 : i32, i32
  }
  func.func @transform_2(%arg0: i32, %arg1: i32) -> (i32, i32) {
    %c0_i32 = arith.constant 0 : i32
    %c0_i32_0 = arith.constant 0 : i32
    return %arg1, %c0_i32 : i32, i32
  }
  func.func @transform_3(%arg0: i32, %arg1: i32) -> (i32, i32) {
    %c0_i32 = arith.constant 0 : i32
    %c0_i32_0 = arith.constant 0 : i32
    %c0_i32_1 = arith.constant 0 : i32
    return %c0_i32, %c0_i32_0 : i32, i32
  }
  func.func @transform_4(%arg0: i32, %arg1: i32) -> (i32, i32) {
    %c0_i32 = arith.constant 0 : i32
    %c0_i32_0 = arith.constant 0 : i32
    %c0_i32_1 = arith.constant 0 : i32
    return %c0_i32, %c0_i32_0 : i32, i32
  }
  func.func @transform_5(%arg0: i32, %arg1: i32) -> (i32, i32, i32) {
    %c0_i32 = arith.constant 0 : i32
    %c0_i32_0 = arith.constant 0 : i32
    return %arg0, %arg1, %c0_i32 : i32, i32, i32
  }
}

</mosaic_0001>

<llo_original>
// kernel: tpu_custom_call.1
$region0: #{tpu_custom_call.1}
  #allocation0 [shape = 'u32[]', space=smem, size = 0x4, offset = 0x4, fixed_abs, tag = 'smem constant byte address 0x4 - core index']
  #allocation1 [shape = 'u32[72,128]{1,0:T(1,128)}', space=vmem, size = 0x9000, scoped, tag = 'internal scratch']
  %s0 = inlined_call_operand.vmem [shape: bf16[2,36,256], index: 0, kind: input, shape index: {}]
  %s1 = inlined_call_operand.vmem [shape: bf16[32,36], index: 1, kind: input, shape index: {}]
  %s2 = inlined_call_operand.vmem [shape: f32[32,3], index: 2, kind: input, shape index: {}]
  %s3 = inlined_call_operand.vmem [shape: f32[16,32], index: 3, kind: input, shape index: {}]
  %s4 = inlined_call_operand.vmem [shape: f32[32,16], index: 4, kind: input, shape index: {}]
  %s5 = inlined_call_operand.hbm [shape: f32[2,32,256], index: 5, kind: output, shape index: {}]
  %s6 = sld [smem:[#allocation0]]
  $region53: #{tpu_custom_call.1} parent=0
    _
  %s8 = ssub.s32 1, %s6
  %s9 = scalar_select 0, %s8, %s6
  $region1: #{tpu_custom_call.1} parent=0
    #allocation2 [shape = 'u8[65536]{0}', space=vmem, size = 0x10000, scoped, tag = 'output window, operand 0']
    #allocation3 [shape = 's32[2]{0}', space=sflag, size = 0x8, scoped, tag = 'scoped memory for tpu_custom_call.1']
    %10 = vsyncpa [#allocation3], 0
    %s11 = scalar_lea.sflag [#allocation3], 1
    %12 = vsyncpa %s11, 0
    loop: start=0, step=1, limit=4
    $region2: #{tpu_custom_call.1} parent=1 // loop_pre_header
      _
    $region3: #{tpu_custom_call.1} parent=1 // loop_header
      %s14 = sphi 0, %s18
      %p15 = scmp.ge.s32.totalorder %s14, 4
      %s21 = sphi 0, %s33
      %s22 = sphi 0, %s29
      %s23 = sphi 0, %s21
      %s24 = sphi 0, %s22
      %s25 = sphi 0, %s23
      %s26 = sphi 0, %s24
      %s36 = sphi 0, %s38
      %s39 = sphi 0, %s36
      %s40 = sphi 0, %s39
      %s56 = sphi 0, %s40
      %s62 = sphi 0, %s64
      %s65 = sphi 0, %s62
      %s66 = sphi 0, %s65
      %s82 = sphi 0, %s66
      %s88 = sphi 0, %s90
      %s91 = sphi 0, %s88
      %s92 = sphi 0, %s91
      %s108 = sphi 0, %s92
      %s112 = sphi 0, %s112
      %s114 = sphi 0, %s112
      %s115 = sphi 0, %s114
      %s129 = sphi 0, %s115
      %s133 = sphi 0, %s133
      %s135 = sphi 0, %s133
      %s136 = sphi 0, %s135
      %s150 = sphi 0, %s136
      %s158 = sphi 0, %s160
      %s161 = sphi 0, %s158
      %s162 = sphi 0, %s161
      %s178 = sphi 0, %s162
    $region4: #{tpu_custom_call.1} parent=1 // loop_header_branch
      %17 = sbr.rel (%p15) target = $region8
    $region5: #{tpu_custom_call.1} parent=1 // loop_body
      %s19 = ssub.s32 %s14, 1
      %s20 = ssub.s32 %s14, 2
      %s27 = sadd.s32 1, %s22
      %p28 = scmp.ge.s32.totalorder %s27, 1
      %s29 = scalar_select %p28, 0, %s27
      %s30 = sadd.s32 1, %s21
      %s31 = scalar_select %p28, %s30, %s21
      %p32 = scmp.ge.s32.totalorder %s31, 2
      %s33 = scalar_select %p32, 0, %s31
      %s34 = ssub.s32 %s21, %s33
      %p35 = scmp.eq.s32.totalorder %s34, 0
      %s37 = sadd.s32 %s36, 1
      %s38 = scalar_select %p35, %s36, %s37
      %p41 = pneg %p35
      %p42 = scmp.eq.s32.totalorder %s14, 1
      %p43 = por %p41, %p42
      %p44 = scmp.ne.s32.totalorder %s36, %s39
      %p45 = scmp.eq.s32.totalorder %s14, 0
      %p46 = por %p44, %p45
      %p47 = scmp.ne.s32.totalorder %s36, %s39
      %p48 = scmp.eq.s32.totalorder %s19, 1
      %p49 = por %p47, %p48
      %p50 = scmp.ne.s32.totalorder %s39, %s40
      %p51 = scmp.eq.s32.totalorder %s19, 0
      %p52 = por %p50, %p51
      %p53 = scmp.ne.s32.totalorder %s39, %s40
      %p54 = scmp.eq.s32.totalorder %s20, 1
      %p55 = por %p53, %p54
      %p57 = scmp.ne.s32.totalorder %s40, %s56
      %p58 = scmp.eq.s32.totalorder %s20, 0
      %p59 = por %p57, %p58
      %s60 = ssub.s32 %s22, %s29
      %p61 = scmp.eq.s32.totalorder %s60, 0
      %s63 = sadd.s32 %s62, 1
      %s64 = scalar_select %p61, %s62, %s63
      %p67 = pneg %p61
      %p68 = scmp.eq.s32.totalorder %s14, 1
      %p69 = por %p67, %p68
      %p70 = scmp.ne.s32.totalorder %s62, %s65
      %p71 = scmp.eq.s32.totalorder %s14, 0
      %p72 = por %p70, %p71
      %p73 = scmp.ne.s32.totalorder %s62, %s65
      %p74 = scmp.eq.s32.totalorder %s19, 1
      %p75 = por %p73, %p74
      %p76 = scmp.ne.s32.totalorder %s65, %s66
      %p77 = scmp.eq.s32.totalorder %s19, 0
      %p78 = por %p76, %p77
      %p79 = scmp.ne.s32.totalorder %s65, %s66
      %p80 = scmp.eq.s32.totalorder %s20, 1
      %p81 = por %p79, %p80
      %p83 = scmp.ne.s32.totalorder %s66, %s82
      %p84 = scmp.eq.s32.totalorder %s20, 0
      %p85 = por %p83, %p84
      %s86 = ssub.s32 %s22, %s29
      %p87 = scmp.eq.s32.totalorder %s86, 0
      %s89 = sadd.s32 %s88, 1
      %s90 = scalar_select %p87, %s88, %s89
      %p93 = pneg %p87
      %p94 = scmp.eq.s32.totalorder %s14, 1
      %p95 = por %p93, %p94
      %p96 = scmp.ne.s32.totalorder %s88, %s91
      %p97 = scmp.eq.s32.totalorder %s14, 0
      %p98 = por %p96, %p97
      %p99 = scmp.ne.s32.totalorder %s88, %s91
      %p100 = scmp.eq.s32.totalorder %s19, 1
      %p101 = por %p99, %p100
      %p102 = scmp.ne.s32.totalorder %s91, %s92
      %p103 = scmp.eq.s32.totalorder %s19, 0
      %p104 = por %p102, %p103
      %p105 = scmp.ne.s32.totalorder %s91, %s92
      %p106 = scmp.eq.s32.totalorder %s20, 1
      %p107 = por %p105, %p106
      %p109 = scmp.ne.s32.totalorder %s92, %s108
      %p110 = scmp.eq.s32.totalorder %s20, 0
      %p111 = por %p109, %p110
      %s113 = sadd.s32 %s112, 1
      %p116 = scmp.eq.s32.totalorder %s14, 1
      %p117 = scmp.ne.s32.totalorder %s112, %s114
      %p118 = scmp.eq.s32.totalorder %s14, 0
      %p119 = por %p117, %p118
      %p120 = scmp.ne.s32.totalorder %s112, %s114
      %p121 = scmp.eq.s32.totalorder %s19, 1
      %p122 = por %p120, %p121
      %p123 = scmp.ne.s32.totalorder %s114, %s115
      %p124 = scmp.eq.s32.totalorder %s19, 0
      %p125 = por %p123, %p124
      %p126 = scmp.ne.s32.totalorder %s114, %s115
      %p127 = scmp.eq.s32.totalorder %s20, 1
      %p128 = por %p126, %p127
      %p130 = scmp.ne.s32.totalorder %s115, %s129
      %p131 = scmp.eq.s32.totalorder %s20, 0
      %p132 = por %p130, %p131
      %s134 = sadd.s32 %s133, 1
      %p137 = scmp.eq.s32.totalorder %s14, 1
      %p138 = scmp.ne.s32.totalorder %s133, %s135
      %p139 = scmp.eq.s32.totalorder %s14, 0
      %p140 = por %p138, %p139
      %p141 = scmp.ne.s32.totalorder %s133, %s135
      %p142 = scmp.eq.s32.totalorder %s19, 1
      %p143 = por %p141, %p142
      %p144 = scmp.ne.s32.totalorder %s135, %s136
      %p145 = scmp.eq.s32.totalorder %s19, 0
      %p146 = por %p144, %p145
      %p147 = scmp.ne.s32.totalorder %s135, %s136
      %p148 = scmp.eq.s32.totalorder %s20, 1
      %p149 = por %p147, %p148
      %p151 = scmp.ne.s32.totalorder %s136, %s150
      %p152 = scmp.eq.s32.totalorder %s20, 0
      %p153 = por %p151, %p152
      %s154 = ssub.s32 %s21, %s33
      %s155 = ssub.s32 %s22, %s29
      %s156 = sor.u32 %s154, %s155
      %p157 = scmp.eq.s32.totalorder %s156, 0
      %s159 = sadd.s32 %s158, 1
      %s160 = scalar_select %p157, %s158, %s159
      %p163 = pneg %p157
      %p164 = scmp.eq.s32.totalorder %s14, 1
      %p165 = por %p163, %p164
      %p166 = scmp.ne.s32.totalorder %s158, %s161
      %p167 = scmp.eq.s32.totalorder %s14, 0
      %p168 = por %p166, %p167
      %p169 = scmp.ne.s32.totalorder %s158, %s161
      %p170 = scmp.eq.s32.totalorder %s19, 1
      %p171 = por %p169, %p170
      %p172 = scmp.ne.s32.totalorder %s161, %s162
      %p173 = scmp.eq.s32.totalorder %s19, 0
      %p174 = por %p172, %p173
      %p175 = scmp.ne.s32.totalorder %s161, %s162
      %p176 = scmp.eq.s32.totalorder %s20, 1
      %p177 = por %p175, %p176
      %p179 = scmp.ne.s32.totalorder %s162, %s178
      %p180 = scmp.eq.s32.totalorder %s20, 0
      %p181 = por %p179, %p180
      %p182 = scmp.le.s32.totalorder 1, %s14
      %p183 = scmp.lt.s32.totalorder %s14, 3
      %p184 = pnand %p182, %p183
      %p185 = pneg %p184
      // Predicated region
      $region9: #{tpu_custom_call.1} parent=5 // pred_check
        _
      $region10: #{tpu_custom_call.1} parent=5 // pred_check_branch
        %187 = sbr.rel (%p184) target = $region12
      $region11: #{tpu_custom_call.1} parent=5 // pred_region
        %s188 = ssub.s32 %s14, 1
        // Predicated region
        $region13: #{tpu_custom_call.1} parent=11 // pred_check
          %p189 = pneg %p78
        $region14: #{tpu_custom_call.1} parent=11 // pred_check_branch
          %191 = sbr.rel (%p189) target = $region16
        $region15: #{tpu_custom_call.1} parent=11 // pred_region
          %s192 = smul.u32 4, %s24
          %p193 = scmp.lt.s32.totalorder %s192, 3
          %s194 = scalar_select %p193, %s192, 3
          %s195 = smul.addr %s194, 4
          %s196 = scalar_lea.vmem %s1, %s195
          %s197 = smul.u32 4, %s24
        $region16: #{tpu_custom_call.1} parent=11 // pred_fallthru
          _
        // Predicated region
        $region17: #{tpu_custom_call.1} parent=11 // pred_check
          %p198 = pneg %p104
        $region18: #{tpu_custom_call.1} parent=11 // pred_check_branch
          %200 = sbr.rel (%p198) target = $region20
        $region19: #{tpu_custom_call.1} parent=11 // pred_region
          %s201 = smul.u32 4, %s24
          %p202 = scmp.lt.s32.totalorder %s201, 3
          %s203 = scalar_select %p202, %s201, 3
          %s204 = smul.addr %s203, 8
          %s205 = scalar_lea.vmem %s2, %s204
          %s206 = smul.u32 4, %s24
        $region20: #{tpu_custom_call.1} parent=11 // pred_fallthru
          _
        // Predicated region
        $region21: #{tpu_custom_call.1} parent=11 // pred_check
          %p207 = pneg %p125
        $region22: #{tpu_custom_call.1} parent=11 // pred_check_branch
          %209 = sbr.rel (%p207) target = $region24
        $region23: #{tpu_custom_call.1} parent=11 // pred_region
          _
        $region24: #{tpu_custom_call.1} parent=11 // pred_fallthru
          _
        // Predicated region
        $region25: #{tpu_custom_call.1} parent=11 // pred_check
          %p210 = pneg %p146
        $region26: #{tpu_custom_call.1} parent=11 // pred_check_branch
          %212 = sbr.rel (%p210) target = $region28
        $region27: #{tpu_custom_call.1} parent=11 // pred_region
          _
        $region28: #{tpu_custom_call.1} parent=11 // pred_fallthru
          _
      $region12: #{tpu_custom_call.1} parent=5 // pred_fallthru
        _
      %p213 = scmp.lt.s32.totalorder %s14, 2
      // Predicated region
      $region29: #{tpu_custom_call.1} parent=5 // pred_check
        %p214 = pneg %p213
      $region30: #{tpu_custom_call.1} parent=5 // pred_check_branch
        %216 = sbr.rel (%p214) target = $region32
      $region31: #{tpu_custom_call.1} parent=5 // pred_region
        // Predicated region
        $region33: #{tpu_custom_call.1} parent=31 // pred_check
          %p217 = pneg %p46
        $region34: #{tpu_custom_call.1} parent=31 // pred_check_branch
          %219 = sbr.rel (%p217) target = $region36
        $region35: #{tpu_custom_call.1} parent=31 // pred_region
          %p220 = scmp.lt.s32.totalorder %s21, 1
          %s221 = scalar_select %p220, %s21, 1
          %s222 = smul.addr %s221, 10
          %s223 = smul.addr %s222, 4
          %s224 = scalar_lea.vmem %s0, %s223
        $region36: #{tpu_custom_call.1} parent=31 // pred_fallthru
          _
      $region32: #{tpu_custom_call.1} parent=5 // pred_fallthru
        _
      %p225 = scmp.le.s32.totalorder 1, %s14
      %p226 = scmp.lt.s32.totalorder %s14, 3
      %p227 = pnand %p225, %p226
      %p228 = pneg %p227
      // Predicated region
      $region37: #{tpu_custom_call.1} parent=5 // pred_check
        _
      $region38: #{tpu_custom_call.1} parent=5 // pred_check_branch
        %230 = sbr.rel (%p227) target = $region40
      $region39: #{tpu_custom_call.1} parent=5 // pred_region
        %s231 = ssub.s32 %s14, 1
        %p232 = scmp.lt.s32.totalorder %s23, 1
        %s233 = scalar_select %p232, %s23, 1
        %s234 = smul.addr %s233, 10
        %s235 = smul.addr %s234, 4
        %s236 = scalar_lea.vmem %s0, %s235
        %p237 = pneg %p52
        %p238 = pneg %p49
        %s239 = smul.u32 4, %s24
        %p240 = scmp.lt.s32.totalorder %s239, 3
        %s241 = scalar_select %p240, %s239, 3
        %s242 = smul.addr %s241, 4
        %s243 = scalar_lea.vmem %s1, %s242
        %p244 = pneg %p78
        %p245 = pneg %p75
        %s246 = smul.u32 4, %s24
        %p247 = scmp.lt.s32.totalorder %s246, 3
        %s248 = scalar_select %p247, %s246, 3
        %s249 = smul.addr %s248, 8
        %s250 = scalar_lea.vmem %s2, %s249
        %p251 = pneg %p104
        %p252 = pneg %p101
        %p253 = pneg %p125
        %p254 = pneg %p122
        %p255 = pneg %p146
        %p256 = pneg %p143
        %p257 = pneg %p174
        %p258 = pneg %p171
        %s259 = sand.u32 %s161, 1
        %s260 = scalar_lea.sflag [#allocation3], %s259
        %s261 = sand.u32 %s161, 1
        %s262 = smul.addr %s261, 64
        %s263 = scalar_lea.vmem [#allocation2], %s262
        %p264 = scmp.lt.s32.totalorder %s23, 1
        %s265 = scalar_select %p264, %s23, 1
        %s266 = smul.addr %s265, 10
        %s267 = smul.addr %s266, 4
        %s268 = scalar_lea.vmem %s0, %s267
        %s269 = smul.u32 4, %s24
        %p270 = scmp.lt.s32.totalorder %s269, 3
        %s271 = scalar_select %p270, %s269, 3
        %s272 = smul.addr %s271, 4
        %s273 = scalar_lea.vmem %s1, %s272
        %s274 = smul.u32 4, %s24
        %s275 = smul.u32 4, %s24
        %p276 = scmp.lt.s32.totalorder %s275, 3
        %s277 = scalar_select %p276, %s275, 3
        %s278 = smul.addr %s277, 8
        %s279 = scalar_lea.vmem %s2, %s278
        %s280 = smul.u32 4, %s24
        %s281 = smul.u32 4, %s24
        %v283 = vld [vmem:[%s268] sm:$0xff]
        %v284 = vld [vmem:[%s268 + $0x8] sm:$0xff]
        %v285 = vld [vmem:[%s268 + $0x10] sm:$0xff]
        %v286 = vld [vmem:[%s268 + $0x18] sm:$0xff]
        %v287 = vld [vmem:[%s268 + $0x20] sm:$0x33]
        %v288 = vld [vmem:[%s273] sm:$0xf]
        %v289 = vld [vmem:[%s273 + $0x4] sm:$0xf]
        %v290 = vld [vmem:[%s273 + $0x8] sm:$0xf]
        %v291 = vld [vmem:[%s273 + $0xc] sm:$0xf]
        %v292 = vld [vmem:[%s279] sm:$0xff]
        %v293 = vld [vmem:[%s279 + $0x8] sm:$0xff]
        %v294 = vld [vmem:[%s279 + $0x10] sm:$0xff]
        %v295 = vld [vmem:[%s279 + $0x18] sm:$0xff]
        %297 = vset.pattern.permute.xlu0 0
        %298 = vperm.xlu0 %297, %v292
        %v299 = vpop.permute.xlu0 %298
        %302 = vset.pattern.permute.xlu0 0
        %303 = vperm.xlu0 %302, %v293
        %v304 = vpop.permute.xlu0 %303
        %307 = vset.pattern.permute.xlu0 0
        %308 = vperm.xlu0 %307, %v294
        %v309 = vpop.permute.xlu0 %308
        %312 = vset.pattern.permute.xlu0 0
        %313 = vperm.xlu0 %312, %v295
        %v314 = vpop.permute.xlu0 %313
        %v320 = vunpack.c.l.b16 %v288
        %v321 = vunpack.c.l.b16 %v289
        %v322 = vunpack.c.l.b16 %v290
        %v323 = vunpack.c.l.b16 %v291
        %v324 = vpack.c.b16 %v321, %v320
        %v325 = vpack.c.b16 %v323, %v322
        %v331 = vunpack.c.l.b16 %v283
        %v332 = vunpack.c.h.b16 %v283
        %v333 = vunpack.c.l.b16 %v284
        %v334 = vunpack.c.h.b16 %v284
        %v335 = vunpack.c.l.b16 %v285
        %v336 = vunpack.c.h.b16 %v285
        %v337 = vunpack.c.l.b16 %v286
        %v338 = vunpack.c.h.b16 %v286
        %v339 = vunpack.c.l.b16 %v287
        %v340 = vunpack.c.h.b16 %v287
        %v341 = vpack.c.b16 %v333, %v331
        %v342 = vpack.c.b16 %v334, %v332
        %v343 = vpack.c.b16 %v337, %v335
        %v344 = vpack.c.b16 %v338, %v336
        %v345 = vpack.c.b16 %v339, %v339
        %v346 = vpack.c.b16 %v340, %v340
        %vm351 = vcmask 293888
        %v353 = vsel %vm351, %v324, 0
        %v356 = vsel %vm351, %v325, 0
        %vm358 = vcmask 1041408
        %v360 = vsel %vm358, %v345, 0
        %v363 = vsel %vm358, %v346, 0
        %365 = vmatpush.bf16.msra.mxu0 0
        %366 = vmatpush.bf16.msra.mxu0 0
        %367 = vmatpush.bf16.msra.mxu0 0
        %368 = vmatpush.bf16.msra.mxu0 0
        %369 = vmatpush.bf16.msra.mxu0 0
        %370 = vmatpush.bf16.msra.mxu0 %v360
        %371 = vmatpush.bf16.msra.mxu0 %v343
        %372 = vmatpush.bf16.msra.mxu0 %v341
        %373 = vmatmul.bf16.gmra.mxu0 %v353
        %v374 = vpop.f32.mrf.mxu0
        %v375 = vadd.f32 %v299, %v374
        %v376 = vpop.f32.mrf.mxu0
        %v377 = vadd.f32 %v304, %v376
        %378 = vmatmul.bf16.gmra.mxu0 %v356
        %v379 = vpop.f32.mrf.mxu0
        %v380 = vadd.f32 %v309, %v379
        %v381 = vpop.f32.mrf.mxu0
        %v382 = vadd.f32 %v314, %v381
        %383 = vdwg.mxu0
        %384 = vmatpush.bf16.msra.mxu0 0
        %385 = vmatpush.bf16.msra.mxu0 0
        %386 = vmatpush.bf16.msra.mxu0 0
        %387 = vmatpush.bf16.msra.mxu0 0
        %388 = vmatpush.bf16.msra.mxu0 0
        %389 = vmatpush.bf16.msra.mxu0 %v363
        %390 = vmatpush.bf16.msra.mxu0 %v344
        %391 = vmatpush.bf16.msra.mxu0 %v342
        %392 = vmatmul.bf16.gmra.mxu0 %v353
        %v393 = vpop.f32.mrf.mxu0
        %v394 = vadd.f32 %v299, %v393
        %v395 = vpop.f32.mrf.mxu0
        %v396 = vadd.f32 %v304, %v395
        %397 = vmatmul.bf16.gmra.mxu0 %v356
        %v398 = vpop.f32.mrf.mxu0
        %v399 = vadd.f32 %v309, %v398
        %v400 = vpop.f32.mrf.mxu0
        %v401 = vadd.f32 %v314, %v400
        %402 = vdwg.mxu0
        %v403 = vadd.f32 %v375, %v394
        %404 = vadd.xlane.f32.xlu0 %v403
        %v405 = vpop.xlane.xlu0 %404
        %v406 = vadd.f32 %v377, %v396
        %407 = vadd.xlane.f32.xlu0 %v406
        %v408 = vpop.xlane.xlu0 %407
        %v409 = vadd.f32 %v380, %v399
        %410 = vadd.xlane.f32.xlu0 %v409
        %v411 = vpop.xlane.xlu0 %410
        %v412 = vadd.f32 %v382, %v401
        %413 = vadd.xlane.f32.xlu0 %v412
        %v414 = vpop.xlane.xlu0 %413
        %v415 = vmul.f32 %v375, %v375
        %v416 = vmul.f32 %v394, %v394
        %v417 = vmul.f32 %v377, %v377
        %v418 = vmul.f32 %v396, %v396
        %v419 = vmul.f32 %v380, %v380
        %v420 = vmul.f32 %v399, %v399
        %v421 = vmul.f32 %v382, %v382
        %v422 = vmul.f32 %v401, %v401
        %v423 = vadd.f32 %v415, %v416
        %424 = vadd.xlane.f32.xlu0 %v423
        %v425 = vpop.xlane.xlu0 %424
        %v426 = vadd.f32 %v417, %v418
        %427 = vadd.xlane.f32.xlu0 %v426
        %v428 = vpop.xlane.xlu0 %427
        %v429 = vadd.f32 %v419, %v420
        %430 = vadd.xlane.f32.xlu0 %v429
        %v431 = vpop.xlane.xlu0 %430
        %v432 = vadd.f32 %v421, %v422
        %433 = vadd.xlane.f32.xlu0 %v432
        %v434 = vpop.xlane.xlu0 %433
        %v435 = vlaneseq
        %v436 = vand.u32 %v435, 127
        %vm437 = vcmp.eq.s32.totalorder %v436, 0
        %v438 = vsel %vm437, %v405, %v425
        %v439 = vsel %vm437, %v408, %v428
        %v440 = vsel %vm437, %v411, %v431
        %v441 = vsel %vm437, %v414, %v434
        %v442 = vld [vmem:[%s3] sm:$0xff]
        %v443 = vld [vmem:[%s3 + $0x8] sm:$0xff]
        %vm444 = vcmask 261120
        %v446 = vsel %vm444, %v442, 0
        %v449 = vsel %vm444, %v443, 0
        %451 = vmatpush.msra.mxu0 0.0
        %452 = vmatpush.msra.mxu0 0.0
        %453 = vmatpush.msra.mxu0 0.0
        %454 = vmatpush.msra.mxu0 0.0
        %455 = vmatpush.msra.mxu0 0.0
        %456 = vmatpush.msra.mxu0 0.0
        %457 = vmatpush.msra.mxu0 0.0
        %458 = vmatpush.msra.mxu0 0.0
        %459 = vmatpush.msra.mxu0 0.0
        %460 = vmatpush.msra.mxu0 0.0
        %461 = vmatpush.msra.mxu0 0.0
        %462 = vmatpush.msra.mxu0 0.0
        %463 = vmatpush.msra.mxu0 %v441
        %464 = vmatpush.msra.mxu0 %v440
        %465 = vmatpush.msra.mxu0 %v439
        %466 = vmatpush.msra.mxu0 %v438
        %467 = vmatmul.f32.gmra.mxu0 %v446
        %v468 = vpop.f32.mrf.mxu0
        %v469 = vadd.f32 0.0, %v468
        %470 = vmatmul.f32.gmra.mxu0 %v449
        %v471 = vpop.f32.mrf.mxu0
        %v472 = vadd.f32 0.0, %v471
        %473 = vdwg.mxu0
        %v474 = vld [vmem:[%s4] sm:$0xff]
        %v475 = vld [vmem:[%s4 + $0x8] sm:$0xff]
        %v476 = vld [vmem:[%s4 + $0x10] sm:$0xff]
        %v477 = vld [vmem:[%s4 + $0x18] sm:$0xff]
        %vm478 = vcmask 130048
        %v480 = vsel %vm478, %v474, 0
        %v483 = vsel %vm478, %v475, 0
        %v486 = vsel %vm478, %v476, 0
        %v489 = vsel %vm478, %v477, 0
        %491 = vmatpush.msra.mxu0 0.0
        %492 = vmatpush.msra.mxu0 0.0
        %493 = vmatpush.msra.mxu0 0.0
        %494 = vmatpush.msra.mxu0 0.0
        %495 = vmatpush.msra.mxu0 0.0
        %496 = vmatpush.msra.mxu0 0.0
        %497 = vmatpush.msra.mxu0 0.0
        %498 = vmatpush.msra.mxu0 0.0
        %499 = vmatpush.msra.mxu0 0.0
        %500 = vmatpush.msra.mxu0 0.0
        %501 = vmatpush.msra.mxu0 0.0
        %502 = vmatpush.msra.mxu0 0.0
        %503 = vmatpush.msra.mxu0 0.0
        %504 = vmatpush.msra.mxu0 0.0
        %505 = vmatpush.msra.mxu0 %v472
        %506 = vmatpush.msra.mxu0 %v469
        %507 = vmatmul.f32.gmra.mxu0 %v480
        %v508 = vpop.f32.mrf.mxu0
        %v509 = vadd.f32 0.0, %v508
        %510 = vmatmul.f32.gmra.mxu0 %v483
        %v511 = vpop.f32.mrf.mxu0
        %v512 = vadd.f32 0.0, %v511
        %513 = vmatmul.f32.gmra.mxu0 %v486
        %v514 = vpop.f32.mrf.mxu0
        %v515 = vadd.f32 0.0, %v514
        %516 = vmatmul.f32.gmra.mxu0 %v489
        %v517 = vpop.f32.mrf.mxu0
        %v518 = vadd.f32 0.0, %v517
        %519 = vdwg.mxu0
        %v520 = vmul.f32 %v509, %v509
        %v521 = vmul.f32 %v512, %v512
        %v522 = vmul.f32 %v515, %v515
        %v523 = vmul.f32 %v518, %v518
        %528 = vrot.lane.b32.xlu0 %v520, 1
        %v529 = vpop.permute.xlu0 %528
        %530 = vrot.lane.b32.xlu0 %v521, 1
        %v531 = vpop.permute.xlu0 %530
        %532 = vrot.lane.b32.xlu0 %v522, 1
        %v533 = vpop.permute.xlu0 %532
        %534 = vrot.lane.b32.xlu0 %v523, 1
        %v535 = vpop.permute.xlu0 %534
        %v540 = vsub.f32 %v509, %v529
        %v541 = vsub.f32 %v512, %v531
        %v542 = vsub.f32 %v515, %v533
        %v543 = vsub.f32 %v518, %v535
        %v544 = vmax.f32 %v540, 0.0
        %v545 = vmax.f32 %v541, 0.0
        %v546 = vmax.f32 %v542, 0.0
        %v547 = vmax.f32 %v543, 0.0
        %v548 = vadd.f32 %v544, 1e-05
        %v549 = vadd.f32 %v545, 1e-05
        %v550 = vadd.f32 %v546, 1e-05
        %v551 = vadd.f32 %v547, 1e-05
        %v552 = vrsqrt.pop %v548
        %v553 = vmul.f32 %v552, %v548
        %v554 = vmul.f32 %v553, %v552
        %v555 = vmul.f32 0.5, %v554
        %v556 = vsub.f32 1.5, %v555
        %v557 = vmul.f32 %v552, %v556
        %vm558 = vweird.f32 %v548
        %vm559 = vweird.f32 %v552
        %vm560 = vmor %vm558, %vm559
        %v561 = vsel %vm560, %v552, %v557
        %v562 = vrsqrt.pop %v549
        %v563 = vmul.f32 %v562, %v549
        %v564 = vmul.f32 %v563, %v562
        %v565 = vmul.f32 0.5, %v564
        %v566 = vsub.f32 1.5, %v565
        %v567 = vmul.f32 %v562, %v566
        %vm568 = vweird.f32 %v549
        %vm569 = vweird.f32 %v562
        %vm570 = vmor %vm568, %vm569
        %v571 = vsel %vm570, %v562, %v567
        %v572 = vrsqrt.pop %v550
        %v573 = vmul.f32 %v572, %v550
        %v574 = vmul.f32 %v573, %v572
        %v575 = vmul.f32 0.5, %v574
        %v576 = vsub.f32 1.5, %v575
        %v577 = vmul.f32 %v572, %v576
        %vm578 = vweird.f32 %v550
        %vm579 = vweird.f32 %v572
        %vm580 = vmor %vm578, %vm579
        %v581 = vsel %vm580, %v572, %v577
        %v582 = vrsqrt.pop %v551
        %v583 = vmul.f32 %v582, %v551
        %v584 = vmul.f32 %v583, %v582
        %v585 = vmul.f32 0.5, %v584
        %v586 = vsub.f32 1.5, %v585
        %v587 = vmul.f32 %v582, %v586
        %vm588 = vweird.f32 %v551
        %vm589 = vweird.f32 %v582
        %vm590 = vmor %vm588, %vm589
        %v591 = vsel %vm590, %v582, %v587
        %593 = vset.pattern.permute.xlu0 0
        %594 = vperm.xlu0 %593, %v509
        %v595 = vpop.permute.xlu0 %594
        %598 = vset.pattern.permute.xlu0 0
        %599 = vperm.xlu0 %598, %v512
        %v600 = vpop.permute.xlu0 %599
        %603 = vset.pattern.permute.xlu0 0
        %604 = vperm.xlu0 %603, %v515
        %v605 = vpop.permute.xlu0 %604
        %608 = vset.pattern.permute.xlu0 0
        %609 = vperm.xlu0 %608, %v518
        %v610 = vpop.permute.xlu0 %609
        %v612 = vsub.f32 %v375, %v595
        %v613 = vsub.f32 %v394, %v595
        %v614 = vsub.f32 %v377, %v600
        %v615 = vsub.f32 %v396, %v600
        %v616 = vsub.f32 %v380, %v605
        %v617 = vsub.f32 %v399, %v605
        %v618 = vsub.f32 %v382, %v610
        %v619 = vsub.f32 %v401, %v610
        %v620 = vmul.f32 %v561, %v292
        %v621 = vmul.f32 %v571, %v293
        %v622 = vmul.f32 %v581, %v294
        %v623 = vmul.f32 %v591, %v295
        %625 = vset.pattern.permute.xlu0 1
        %626 = vperm.xlu0 %625, %v620
        %v627 = vpop.permute.xlu0 %626
        %630 = vset.pattern.permute.xlu0 1
        %631 = vperm.xlu0 %630, %v621
        %v632 = vpop.permute.xlu0 %631
        %635 = vset.pattern.permute.xlu0 1
        %636 = vperm.xlu0 %635, %v622
        %v637 = vpop.permute.xlu0 %636
        %640 = vset.pattern.permute.xlu0 1
        %641 = vperm.xlu0 %640, %v623
        %v642 = vpop.permute.xlu0 %641
        %v644 = vmul.f32 %v612, %v627
        %v645 = vmul.f32 %v613, %v627
        %v646 = vmul.f32 %v614, %v632
        %v647 = vmul.f32 %v615, %v632
        %v648 = vmul.f32 %v616, %v637
        %v649 = vmul.f32 %v617, %v637
        %v650 = vmul.f32 %v618, %v642
        %v651 = vmul.f32 %v619, %v642
        %652 = vset.pattern.permute.xlu0 2
        %653 = vperm.xlu0 %652, %v292
        %v654 = vpop.permute.xlu0 %653
        %656 = vset.pattern.permute.xlu0 2
        %657 = vperm.xlu0 %656, %v293
        %v658 = vpop.permute.xlu0 %657
        %660 = vset.pattern.permute.xlu0 2
        %661 = vperm.xlu0 %660, %v294
        %v662 = vpop.permute.xlu0 %661
        %664 = vset.pattern.permute.xlu0 2
        %665 = vperm.xlu0 %664, %v295
        %v666 = vpop.permute.xlu0 %665
        %v668 = vadd.f32 %v644, %v654
        %v669 = vadd.f32 %v645, %v654
        %v670 = vadd.f32 %v646, %v658
        %v671 = vadd.f32 %v647, %v658
        %v672 = vadd.f32 %v648, %v662
        %v673 = vadd.f32 %v649, %v662
        %v674 = vadd.f32 %v650, %v666
        %v675 = vadd.f32 %v651, %v666
        %vm676 = vcmp.gt.f32.partialorder %v668, 0.0
        %vm677 = vcmp.gt.f32.partialorder %v669, 0.0
        %vm678 = vcmp.gt.f32.partialorder %v670, 0.0
        %vm679 = vcmp.gt.f32.partialorder %v671, 0.0
        %vm680 = vcmp.gt.f32.partialorder %v672, 0.0
        %vm681 = vcmp.gt.f32.partialorder %v673, 0.0
        %vm682 = vcmp.gt.f32.partialorder %v674, 0.0
        %vm683 = vcmp.gt.f32.partialorder %v675, 0.0
        %v684 = vmin.f32 %v668, 0.0
        %v685 = vmin.f32 %v669, 0.0
        %v686 = vmin.f32 %v670, 0.0
        %v687 = vmin.f32 %v671, 0.0
        %v688 = vmin.f32 %v672, 0.0
        %v689 = vmin.f32 %v673, 0.0
        %v690 = vmin.f32 %v674, 0.0
        %v691 = vmin.f32 %v675, 0.0
        %v692 = vmul.f32 %v684, 1.442695
        %v693 = vpow.pop %v692
        %v694 = vmul.f32 %v685, 1.442695
        %v695 = vpow.pop %v694
        %v696 = vmul.f32 %v686, 1.442695
        %v697 = vpow.pop %v696
        %v698 = vmul.f32 %v687, 1.442695
        %v699 = vpow.pop %v698
        %v700 = vmul.f32 %v688, 1.442695
        %v701 = vpow.pop %v700
        %v702 = vmul.f32 %v689, 1.442695
        %v703 = vpow.pop %v702
        %v704 = vmul.f32 %v690, 1.442695
        %v705 = vpow.pop %v704
        %v706 = vmul.f32 %v691, 1.442695
        %v707 = vpow.pop %v706
        %v708 = vsub.f32 %v693, 1.0
        %v709 = vsub.f32 %v695, 1.0
        %v710 = vsub.f32 %v697, 1.0
        %v711 = vsub.f32 %v699, 1.0
        %v712 = vsub.f32 %v701, 1.0
        %v713 = vsub.f32 %v703, 1.0
        %v714 = vsub.f32 %v705, 1.0
        %v715 = vsub.f32 %v707, 1.0
        %v716 = vsel %vm676, %v668, %v708
        %v717 = vsel %vm677, %v669, %v709
        %v718 = vsel %vm678, %v670, %v710
        %v719 = vsel %vm679, %v671, %v711
        %v720 = vsel %vm680, %v672, %v712
        %v721 = vsel %vm681, %v673, %v713
        %v722 = vsel %vm682, %v674, %v714
        %v723 = vsel %vm683, %v675, %v715
        %724 = vst [vmem:[%s263] sm:$0xff] %v716
        %725 = vst [vmem:[%s263 + $0x8] sm:$0xff] %v717
        %726 = vst [vmem:[%s263 + $0x10] sm:$0xff] %v718
        %727 = vst [vmem:[%s263 + $0x18] sm:$0xff] %v719
        %728 = vst [vmem:[%s263 + $0x20] sm:$0xff] %v720
        %729 = vst [vmem:[%s263 + $0x28] sm:$0xff] %v721
        %730 = vst [vmem:[%s263 + $0x30] sm:$0xff] %v722
        %731 = vst [vmem:[%s263 + $0x38] sm:$0xff] %v723
        %s732 = sand.u32 %s161, 1
        %s733 = scalar_lea.sflag [#allocation3], %s732
        %s734 = sand.u32 %s161, 1
        %s735 = smul.addr %s734, 64
        %s736 = scalar_lea.vmem [#allocation2], %s735
        // Predicated region
        $region41: #{tpu_custom_call.1} parent=39 // pred_check
          %p737 = pneg %p171
        $region42: #{tpu_custom_call.1} parent=39 // pred_check_branch
          %739 = sbr.rel (%p737) target = $region44
        $region43: #{tpu_custom_call.1} parent=39 // pred_region
          %s740 = smul.u32 4, %s24
          %742 = vsyncadd %s733, 0
          %s743 = smul.addr %s740, 2
          %s744 = smul.addr %s23, 8
          %s745 = sadd.s32 %s743, %s744
          %s746 = smul.addr %s745, 8
          %s747 = scalar_lea.hbm %s5, %s746
          %s748 = sshll.u32 %s736, 4
          %s749 = int_to_ptr.vmem [resolvable:$true] %s748
          %s750 = sshll.u32 %s747, 4
          %s751 = int_to_ptr.hbm [resolvable:$true] %s750
          %756 = dma.vmem_to_hbm [thread:$0]  %s749, 1024, %s751, %s733, 256, 256, 16
        $region44: #{tpu_custom_call.1} parent=39 // pred_fallthru
          _
      $region40: #{tpu_custom_call.1} parent=5 // pred_fallthru
        _
      %p757 = scmp.le.s32.totalorder 2, %s14
      // Predicated region
      $region45: #{tpu_custom_call.1} parent=5 // pred_check
        %p758 = pneg %p757
      $region46: #{tpu_custom_call.1} parent=5 // pred_check_branch
        %760 = sbr.rel (%p758) target = $region48
      $region47: #{tpu_custom_call.1} parent=5 // pred_region
        %s761 = ssub.s32 %s14, 2
        // Predicated region
        $region49: #{tpu_custom_call.1} parent=47 // pred_check
          %p762 = pneg %p177
        $region50: #{tpu_custom_call.1} parent=47 // pred_check_branch
          %764 = sbr.rel (%p762) target = $region52
        $region51: #{tpu_custom_call.1} parent=47 // pred_region
          %s765 = sand.u32 %s162, 1
          %s766 = scalar_lea.sflag [#allocation3], %s765
          %s767 = sand.u32 %s162, 1
          %s768 = smul.addr %s767, 64
          %s769 = scalar_lea.vmem [#allocation2], %s768
          %771 = dma.done %s766, 1024
        $region52: #{tpu_custom_call.1} parent=47 // pred_fallthru
          _
      $region48: #{tpu_custom_call.1} parent=5 // pred_fallthru
        _
    $region6: #{tpu_custom_call.1} parent=1 // loop_footer
      %s18 = sadd.s32 1, %s14
    $region7: #{tpu_custom_call.1} parent=1 // loop_footer_branch
      %13 = sbr.rel target = $region3
    $region8: #{tpu_custom_call.1} parent=1 // loop_exit
      _
    %772 = vsyncpa [#allocation3], 1
    %s773 = scalar_lea.sflag [#allocation3], 1
    %774 = vsyncpa %s773, 1

</llo_original>
